<compile_context>
chip_gen: v7x
topology: tpu7x:2x2x1
jax: 0.10.0
libtpu: 0.0.40
codegen_flags: <defaults>
</compile_context>

<pallas_src>
import functools

import jax
import jax.numpy as jnp
from jax.experimental import pallas as pl
from jax.experimental.pallas import tpu as pltpu

EPS = 1e-08
_LANE = 128
# Per-batch slabs at/below this size keep the fused path even at small M
# (the exposed whole-slab DMA is only a few microseconds there).
_SMALL_SLAB_BYTES = 2 * 1024 * 1024


def _round_up(x: int, m: int) -> int:
    return (x + m - 1) // m * m


def _vmem_budgets():
    """Generation-aware VMEM budgets (v5e/v6e: 128 MiB, v7x: 64 MiB)."""
    cap = 64 * 1024 * 1024  # conservative default = v7x per-TensorCore VMEM
    try:
        info = pltpu.get_tpu_info()
        cap = int(getattr(info, "vmem_capacity_bytes", cap)) or cap
    except Exception:
        pass
    vmem_limit = int(cap * 0.80)      # headroom for Mosaic scratch / semaphores
    single_budget = int(cap * 0.40)   # fused whole-slab working-set budget
    tile_budget = max(4 * 1024 * 1024, int(cap * 0.10))  # per-tile working set
    return vmem_limit, single_budget, tile_budget


# ----------------------------------------------------------------------------
# Fused single-pass kernel: whole (1, N, K) slab resident per batch element.
# ----------------------------------------------------------------------------
def _gln_fused_kernel(inv_count, y_ref, gamma_ref, beta_ref, out_ref):
    # Re-read y_ref per phase (cheap VMEM reads) so large f32 temporaries are
    # not live across phases — matters most for bf16 inputs.
    mean = jnp.sum(y_ref[...].astype(jnp.float32)) * inv_count
    d = y_ref[...].astype(jnp.float32) - mean           # centered (== torch)
    var = jnp.sum(d * d) * inv_count
    inv_std = jax.lax.rsqrt(var + EPS)

    gamma = gamma_ref[...].astype(jnp.float32)           # (N, 1)
    beta = beta_ref[...].astype(jnp.float32)              # (N, 1)
    scale = gamma * inv_std                                # (N, 1)
    shift = beta - mean * scale                            # (N, 1)
    out_ref[...] = (
        y_ref[...].astype(jnp.float32) * scale[None] + shift[None]
    ).astype(out_ref.dtype)


# ----------------------------------------------------------------------------
# Two-pass K-tiled path (large per-batch slabs / small-batch large slabs).
# Pass 1: per-lane partial moments accumulated over the K tiles in a VMEM
#         scratch; mean / inv_std finalized in-kernel on the last K tile.
# ----------------------------------------------------------------------------
def _gln_moments_kernel(inv_count, tk, k_true, ragged,
                        y_ref, stats_ref, acc_ref):
    kt = pl.program_id(1)

    @pl.when(kt == 0)
    def _init():
        acc_ref[...] = jnp.zeros_like(acc_ref)

    y2d = y_ref[0].astype(jnp.float32)                   # (N, tk)
    if ragged:
        # Mask the out-of-bounds lanes of the ragged last tile (the input
        # block past K holds undefined data).
        lane = jax.lax.broadcasted_iota(jnp.int32, y2d.shape, 1)
        y2d = jnp.where(kt * tk + lane < k_true, y2d, 0.0)

    acc_ref[0, :] += jnp.sum(y2d, axis=0)                # per-lane sum
    acc_ref[1, :] += jnp.sum(y2d * y2d, axis=0)          # per-lane sum of sq

    @pl.when(kt == pl.num_programs(1) - 1)
    def _finish():
        # NOTE: E[y^2] - mean^2 can lose precision when |mean| >> std; the
        # fused path uses the centered form, this path accepts the shortcut to
        # keep total HBM traffic at 2 reads + 1 write of y.
        mean = jnp.sum(acc_ref[0, :]) * inv_count
        var = jnp.maximum(jnp.sum(acc_ref[1, :]) * inv_count - mean * mean, 0.0)
        inv_std = jax.lax.rsqrt(var + EPS)
        stats_ref[0, 0, :] = jnp.full((_LANE,), mean, dtype=jnp.float32)
        stats_ref[0, 1, :] = jnp.full((_LANE,), inv_std, dtype=jnp.float32)


# Pass 2: scale/shift recomputed in-kernel (O(N) VPU work), one FMA / element.
def _gln_apply_kernel(y_ref, stats_ref, gamma_ref, beta_ref, out_ref):
    stats = stats_ref[...]                                # (1, 2, 128) f32
    mean = stats[0, 0, 0]
    inv_std = stats[0, 1, 0]
    gamma = gamma_ref[...].astype(jnp.float32)            # (N, 1)
    beta = beta_ref[...].astype(jnp.float32)              # (N, 1)
    scale = gamma * inv_std                                # (N, 1)
    shift = beta - mean * scale                            # (N, 1)
    out_ref[...] = (
        y_ref[...].astype(jnp.float32) * scale[None] + shift[None]
    ).astype(out_ref.dtype)


# ----------------------------------------------------------------------------
# Wrapper
# ----------------------------------------------------------------------------
def global_layer_norm(y, gamma, beta, *, force_tiled=False, tile_k=None):
    """gLN forward. y: [M, N, K]; gamma, beta: [N, 1]."""
    M, N, K = y.shape
    itemsize = jnp.dtype(y.dtype).itemsize
    inv_count = 1.0 / float(N * K)
    vmem_limit, single_budget, tile_budget = _vmem_budgets()

    # dtype-aware per-element VMEM working set:
    #   double-buffered in + out blocks (2 * 2 * itemsize) + ~2 f32 temps.
    elem_ws = 4 * itemsize + 8
    slab_bytes = N * K * itemsize

    use_single = (
        not force_tiled
        and N * K * elem_ws <= single_budget
        # With grid=(M,) the fused path has at most M pipeline stages; for a
        # small batch with a large slab the whole-slab DMA would be exposed,
        # so prefer the fully pipelined tiled path there.
        and (M >= 4 or slab_bytes <= _SMALL_SLAB_BYTES)
    )

    # -------------------- fused single-pass path --------------------
    if use_single:
        return pl.pallas_call(
            functools.partial(_gln_fused_kernel, inv_count),
            out_shape=jax.ShapeDtypeStruct((M, N, K), y.dtype),
            grid_spec=pltpu.PrefetchScalarGridSpec(
                num_scalar_prefetch=0,
                grid=(M,),
                in_specs=[
                    pl.BlockSpec((1, N, K), lambda m: (m, 0, 0)),
                    pl.BlockSpec((N, 1), lambda m: (0, 0)),
                    pl.BlockSpec((N, 1), lambda m: (0, 0)),
                ],
                out_specs=pl.BlockSpec((1, N, K), lambda m: (m, 0, 0)),
            ),
            compiler_params=pltpu.CompilerParams(
                dimension_semantics=("parallel",),
                vmem_limit_bytes=vmem_limit,
            ),
            cost_estimate=pl.CostEstimate(
                flops=8 * M * N * K,
                transcendentals=M,
                bytes_accessed=2 * M * N * K * itemsize + 2 * N * 4,
            ),
        )(y, gamma, beta)

    # -------------------- K-tiled two-pass path --------------------
    if tile_k is not None:
        tk = max(_LANE, _round_up(tile_k, _LANE))
    else:
        tk = max(_LANE, (tile_budget // (N * elem_ws)) // _LANE * _LANE)
    tk = min(tk, _round_up(K, _LANE))
    n_kt = (K + tk - 1) // tk
    ragged = (K % tk) != 0

    # Pass 1: moments; stats[m, 0, :] = mean_m, stats[m, 1, :] = inv_std_m.
    stats = pl.pallas_call(
        functools.partial(_gln_moments_kernel, inv_count, tk, K, ragged),
        out_shape=jax.ShapeDtypeStruct((M, 2, _LANE), jnp.float32),
        grid_spec=pltpu.PrefetchScalarGridSpec(
            num_scalar_prefetch=0,
            grid=(M, n_kt),
            in_specs=[pl.BlockSpec((1, N, tk), lambda m, k: (m, 0, k))],
            out_specs=pl.BlockSpec((1, 2, _LANE), lambda m, k: (m, 0, 0)),
            scratch_shapes=[pltpu.VMEM((2, tk), jnp.float32)],
        ),
        compiler_params=pltpu.CompilerParams(
            dimension_semantics=("parallel", "arbitrary"),
            vmem_limit_bytes=vmem_limit,
        ),
        cost_estimate=pl.CostEstimate(
            flops=3 * M * N * K,
            transcendentals=M,
            bytes_accessed=M * N * K * itemsize + M * 2 * _LANE * 4,
        ),
    )(y)

    # Pass 2: normalize; both grid axes parallel (feeds both v7x TensorCores).
    return pl.pallas_call(
        _gln_apply_kernel,
        out_shape=jax.ShapeDtypeStruct((M, N, K), y.dtype),
        grid_spec=pltpu.PrefetchScalarGridSpec(
            num_scalar_prefetch=0,
            grid=(M, n_kt),
            in_specs=[
                pl.BlockSpec((1, N, tk), lambda m, k: (m, 0, k)),
                pl.BlockSpec((1, 2, _LANE), lambda m, k: (m, 0, 0)),
                pl.BlockSpec((N, 1), lambda m, k: (0, 0)),
                pl.BlockSpec((N, 1), lambda m, k: (0, 0)),
            ],
            out_specs=pl.BlockSpec((1, N, tk), lambda m, k: (m, 0, k)),
        ),
        compiler_params=pltpu.CompilerParams(
            dimension_semantics=("parallel", "parallel"),
            vmem_limit_bytes=vmem_limit,
        ),
        cost_estimate=pl.CostEstimate(
            flops=2 * M * N * K + 2 * M * N,
            transcendentals=0,
            bytes_accessed=(2 * M * N * K * itemsize
                            + M * 2 * _LANE * 4 + 2 * N * 4),
        ),
    )(y, stats, gamma, beta)


def reference_gln(y, gamma, beta):
    # Pure-JAX reference reproducing the PyTorch forward exactly.
    mean = jnp.mean(jnp.mean(y, axis=1, keepdims=True), axis=2, keepdims=True)
    var = jnp.mean(
        jnp.mean((y - mean) ** 2, axis=1, keepdims=True), axis=2, keepdims=True
    )
    return gamma[None, :, :] * (y - mean) / jnp.sqrt(var + EPS) + beta[None, :, :]


if __name__ == "__main__":
    M, N, K = 2, 4, 16  # batch, channels, length

    key = jax.random.PRNGKey(0)
    k1, k2, k3, k4, k5 = jax.random.split(key, 5)
    y = jax.random.normal(k1, (M, N, K), dtype=jnp.float32)

    # Deterministic parameter init matching reset_parameters(): gamma=1, beta=0.
    gamma = jnp.ones((N, 1), dtype=jnp.float32)
    beta = jnp.zeros((N, 1), dtype=jnp.float32)

    # Fused single-pass path (default for shapes that fit VMEM).
    out = jax.block_until_ready(global_layer_norm(y, gamma, beta))
    ref = reference_gln(y, gamma, beta)
    assert out.shape == (M, N, K)
    assert jnp.allclose(out, ref, atol=1e-5, rtol=1e-5)

    # K-tiled two-pass path (used for large slabs), K a multiple of the tile.
    K2 = 256
    y2 = jax.random.normal(k2, (M, N, K2), dtype=jnp.float32)
    gamma2 = 1.0 + 0.1 * jax.random.normal(k3, (N, 1), dtype=jnp.float32)
    beta2 = 0.1 * jax.random.normal(k4, (N, 1), dtype=jnp.float32)
    out2 = jax.block_until_ready(
        global_layer_norm(y2, gamma2, beta2, force_tiled=True, tile_k=128)
    )
    ref2 = reference_gln(y2, gamma2, beta2)
    assert out2.shape == (M, N, K2)
    assert jnp.allclose(out2, ref2, atol=1e-5, rtol=1e-5)

    # Tiled path with a ragged last tile (K not a multiple of 128): exercises
    # the in-kernel lane mask and the masked partial output block.
    K3 = 200
    y3 = jax.random.normal(k5, (M, N, K3), dtype=jnp.float32)
    out3 = jax.block_until_ready(
        global_layer_norm(y3, gamma2, beta2, force_tiled=True, tile_k=128)
    )
    ref3 = reference_gln(y3, gamma2, beta2)
    assert out3.shape == (M, N, K3)
    assert jnp.allclose(out3, ref3, atol=1e-5, rtol=1e-5)

    print("KERNEL_OK")
</pallas_src>

<mosaic_0001>
module attributes {stable_mosaic.version = 11 : i64} {
  func.func @_gln_fused_kernel(%arg0: i32, %arg1: memref<1x4x16xf32, #tpu.memory_space<vmem>>, %arg2: memref<4x1xf32, #tpu.memory_space<vmem>>, %arg3: memref<4x1xf32, #tpu.memory_space<vmem>>, %arg4: memref<1x4x16xf32, #tpu.memory_space<vmem>>) attributes {dimension_semantics = [#tpu.dimension_semantics<parallel>], iteration_bounds = array<i64: 2>, scalar_prefetch = 0 : i64, scratch_operands = 0 : i64, tpu.core_type = #tpu.core_type<tc>, window_params = [{transform_indices = @transform_0, window_bounds = array<i64: 1, 4, 16>}, {pipeline_mode = #tpu.pipeline_mode<synchronous>, transform_indices = @transform_1, window_bounds = array<i64: 4, 1>}, {pipeline_mode = #tpu.pipeline_mode<synchronous>, transform_indices = @transform_2, window_bounds = array<i64: 4, 1>}, {transform_indices = @transform_3, window_bounds = array<i64: 1, 4, 16>}]} {
    %c0 = arith.constant 0 : index
    %c0_0 = arith.constant 0 : index
    %c0_1 = arith.constant 0 : index
    %0 = vector.load %arg1[%c0, %c0_0, %c0_1] : memref<1x4x16xf32, #tpu.memory_space<vmem>>, vector<1x4x16xf32>
    %1 = vector.shape_cast %0 : vector<1x4x16xf32> to vector<1x1x4x16xf32>
    %cst = arith.constant dense<0.000000e+00> : vector<1xf32>
    %2 = vector.multi_reduction <add>, %1, %cst [1, 2, 3] : vector<1x1x4x16xf32> to vector<1xf32>
    %3 = vector.shape_cast %2 : vector<1xf32> to vector<1x1x1x1xf32>
    %4 = vector.extract %3[0, 0, 0, 0] : f32 from vector<1x1x1x1xf32>
    %cst_2 = arith.constant 1.562500e-02 : f32
    %5 = arith.mulf %4, %cst_2 : f32
    %c0_3 = arith.constant 0 : index
    %c0_4 = arith.constant 0 : index
    %c0_5 = arith.constant 0 : index
    %6 = vector.load %arg1[%c0_3, %c0_4, %c0_5] : memref<1x4x16xf32, #tpu.memory_space<vmem>>, vector<1x4x16xf32>
    %7 = vector.broadcast %5 : f32 to vector<1x4x16xf32>
    %8 = arith.subf %6, %7 : vector<1x4x16xf32>
    %9 = arith.mulf %8, %8 : vector<1x4x16xf32>
    %10 = vector.shape_cast %9 : vector<1x4x16xf32> to vector<1x1x4x16xf32>
    %cst_6 = arith.constant dense<0.000000e+00> : vector<1xf32>
    %11 = vector.multi_reduction <add>, %10, %cst_6 [1, 2, 3] : vector<1x1x4x16xf32> to vector<1xf32>
    %12 = vector.shape_cast %11 : vector<1xf32> to vector<1x1x1x1xf32>
    %13 = vector.extract %12[0, 0, 0, 0] : f32 from vector<1x1x1x1xf32>
    %cst_7 = arith.constant 1.562500e-02 : f32
    %14 = arith.mulf %13, %cst_7 : f32
    %cst_8 = arith.constant 9.99999993E-9 : f32
    %15 = arith.addf %14, %cst_8 : f32
    %16 = math.rsqrt %15 : f32
    %c0_9 = arith.constant 0 : index
    %c0_10 = arith.constant 0 : index
    %17 = vector.load %arg2[%c0_9, %c0_10] : memref<4x1xf32, #tpu.memory_space<vmem>>, vector<4x1xf32>
    %c0_11 = arith.constant 0 : index
    %c0_12 = arith.constant 0 : index
    %18 = vector.load %arg3[%c0_11, %c0_12] : memref<4x1xf32, #tpu.memory_space<vmem>>, vector<4x1xf32>
    %19 = vector.broadcast %16 : f32 to vector<4x1xf32>
    %20 = arith.mulf %17, %19 : vector<4x1xf32>
    %21 = vector.broadcast %5 : f32 to vector<4x1xf32>
    %22 = arith.mulf %21, %20 : vector<4x1xf32>
    %23 = arith.subf %18, %22 : vector<4x1xf32>
    %c0_13 = arith.constant 0 : index
    %c0_14 = arith.constant 0 : index
    %c0_15 = arith.constant 0 : index
    %24 = vector.load %arg1[%c0_13, %c0_14, %c0_15] : memref<1x4x16xf32, #tpu.memory_space<vmem>>, vector<1x4x16xf32>
    %25 = vector.shape_cast %20 : vector<4x1xf32> to vector<1x4x1xf32>
    %26 = vector.broadcast %25 : vector<1x4x1xf32> to vector<1x4x16xf32>
    %27 = arith.mulf %24, %26 : vector<1x4x16xf32>
    %28 = vector.shape_cast %23 : vector<4x1xf32> to vector<1x4x1xf32>
    %29 = vector.broadcast %28 : vector<1x4x1xf32> to vector<1x4x16xf32>
    %30 = arith.addf %27, %29 : vector<1x4x16xf32>
    %c0_16 = arith.constant 0 : index
    %c0_17 = arith.constant 0 : index
    %c0_18 = arith.constant 0 : index
    %31 = vector.load %arg4[%c0_16, %c0_17, %c0_18] : memref<1x4x16xf32, #tpu.memory_space<vmem>>, vector<1x4x16xf32>
    tpu.vector_store %arg4[%c0_16, %c0_17, %c0_18], %30 {strides = array<i32>} : memref<1x4x16xf32, #tpu.memory_space<vmem>>, vector<1x4x16xf32>,
    return
  }
  func.func @transform_0(%arg0: i32) -> (i32, i32, i32) {
    %c0_i32 = arith.constant 0 : i32
    %c0_i32_0 = arith.constant 0 : i32
    %c0_i32_1 = arith.constant 0 : i32
    return %arg0, %c0_i32, %c0_i32_0 : i32, i32, i32
  }
  func.func @transform_1(%arg0: i32) -> (i32, i32) {
    %c0_i32 = arith.constant 0 : i32
    %c0_i32_0 = arith.constant 0 : i32
    %c0_i32_1 = arith.constant 0 : i32
    return %c0_i32, %c0_i32_0 : i32, i32
  }
  func.func @transform_2(%arg0: i32) -> (i32, i32) {
    %c0_i32 = arith.constant 0 : i32
    %c0_i32_0 = arith.constant 0 : i32
    %c0_i32_1 = arith.constant 0 : i32
    return %c0_i32, %c0_i32_0 : i32, i32
  }
  func.func @transform_3(%arg0: i32) -> (i32, i32, i32) {
    %c0_i32 = arith.constant 0 : i32
    %c0_i32_0 = arith.constant 0 : i32
    %c0_i32_1 = arith.constant 0 : i32
    return %arg0, %c0_i32, %c0_i32_0 : i32, i32, i32
  }
}

</mosaic_0001>

<llo_original>
// kernel: tpu_custom_call.1
$region0: #{tpu_custom_call.1}
  #allocation0 [shape = 'u32[]', space=smem, size = 0x4, offset = 0x4, fixed_abs, tag = 'smem constant byte address 0x4 - core index']
  #allocation1 [shape = 'u32[144,128]{1,0:T(1,128)}', space=vmem, size = 0x12000, scoped, tag = 'internal scratch']
  %s0 = inlined_call_operand.vmem [shape: f32[2,4,16], index: 0, kind: input, shape index: {}]
  %s1 = inlined_call_operand.vmem [shape: f32[4,1], index: 1, kind: input, shape index: {}]
  %s2 = inlined_call_operand.vmem [shape: f32[4,1], index: 2, kind: input, shape index: {}]
  %s3 = inlined_call_operand.hbm [shape: f32[2,4,16], index: 3, kind: output, shape index: {}]
  %s4 = sld [smem:[#allocation0]]
  $region45: #{tpu_custom_call.1} parent=0
    _
  %s6 = ssub.s32 1, %s4
  %s7 = scalar_select 0, %s6, %s4
  $region1: #{tpu_custom_call.1} parent=0
    #allocation2 [shape = 'u8[4096]{0}', space=vmem, size = 0x1000, scoped, tag = 'output window, operand 0']
    #allocation3 [shape = 's32[2]{0}', space=sflag, size = 0x8, scoped, tag = 'scoped memory for tpu_custom_call.1']
    %8 = vsyncpa [#allocation3], 0
    %s9 = scalar_lea.sflag [#allocation3], 1
    %10 = vsyncpa %s9, 0
    loop: start=0, step=1, limit=4
    $region2: #{tpu_custom_call.1} parent=1 // loop_pre_header
      _
    $region3: #{tpu_custom_call.1} parent=1 // loop_header
      %s12 = sphi 0, %s16
      %p13 = scmp.ge.s32.totalorder %s12, 4
      %s22 = sphi 0, %s24
      %s25 = sphi 0, %s22
      %s26 = sphi 0, %s25
      %s42 = sphi 0, %s26
      %s46 = sphi 0, %s46
      %s48 = sphi 0, %s46
      %s49 = sphi 0, %s48
      %s63 = sphi 0, %s49
      %s67 = sphi 0, %s67
      %s69 = sphi 0, %s67
      %s70 = sphi 0, %s69
      %s84 = sphi 0, %s70
      %s90 = sphi 0, %s92
      %s93 = sphi 0, %s90
      %s94 = sphi 0, %s93
      %s110 = sphi 0, %s94
    $region4: #{tpu_custom_call.1} parent=1 // loop_header_branch
      %15 = sbr.rel (%p13) target = $region8
    $region5: #{tpu_custom_call.1} parent=1 // loop_body
      %s17 = ssub.s32 %s12, 1
      %s18 = ssub.s32 %s12, 2
      %s19 = sadd.s32 %s12, 1
      %s20 = ssub.s32 %s12, %s19
      %p21 = scmp.eq.s32.totalorder %s20, 0
      %s23 = sadd.s32 %s22, 1
      %s24 = scalar_select %p21, %s22, %s23
      %p27 = pneg %p21
      %p28 = scmp.eq.s32.totalorder %s12, 1
      %p29 = por %p27, %p28
      %p30 = scmp.ne.s32.totalorder %s22, %s25
      %p31 = scmp.eq.s32.totalorder %s12, 0
      %p32 = por %p30, %p31
      %p33 = scmp.ne.s32.totalorder %s22, %s25
      %p34 = scmp.eq.s32.totalorder %s17, 1
      %p35 = por %p33, %p34
      %p36 = scmp.ne.s32.totalorder %s25, %s26
      %p37 = scmp.eq.s32.totalorder %s17, 0
      %p38 = por %p36, %p37
      %p39 = scmp.ne.s32.totalorder %s25, %s26
      %p40 = scmp.eq.s32.totalorder %s18, 1
      %p41 = por %p39, %p40
      %p43 = scmp.ne.s32.totalorder %s26, %s42
      %p44 = scmp.eq.s32.totalorder %s18, 0
      %p45 = por %p43, %p44
      %s47 = sadd.s32 %s46, 1
      %p50 = scmp.eq.s32.totalorder %s12, 1
      %p51 = scmp.ne.s32.totalorder %s46, %s48
      %p52 = scmp.eq.s32.totalorder %s12, 0
      %p53 = por %p51, %p52
      %p54 = scmp.ne.s32.totalorder %s46, %s48
      %p55 = scmp.eq.s32.totalorder %s17, 1
      %p56 = por %p54, %p55
      %p57 = scmp.ne.s32.totalorder %s48, %s49
      %p58 = scmp.eq.s32.totalorder %s17, 0
      %p59 = por %p57, %p58
      %p60 = scmp.ne.s32.totalorder %s48, %s49
      %p61 = scmp.eq.s32.totalorder %s18, 1
      %p62 = por %p60, %p61
      %p64 = scmp.ne.s32.totalorder %s49, %s63
      %p65 = scmp.eq.s32.totalorder %s18, 0
      %p66 = por %p64, %p65
      %s68 = sadd.s32 %s67, 1
      %p71 = scmp.eq.s32.totalorder %s12, 1
      %p72 = scmp.ne.s32.totalorder %s67, %s69
      %p73 = scmp.eq.s32.totalorder %s12, 0
      %p74 = por %p72, %p73
      %p75 = scmp.ne.s32.totalorder %s67, %s69
      %p76 = scmp.eq.s32.totalorder %s17, 1
      %p77 = por %p75, %p76
      %p78 = scmp.ne.s32.totalorder %s69, %s70
      %p79 = scmp.eq.s32.totalorder %s17, 0
      %p80 = por %p78, %p79
      %p81 = scmp.ne.s32.totalorder %s69, %s70
      %p82 = scmp.eq.s32.totalorder %s18, 1
      %p83 = por %p81, %p82
      %p85 = scmp.ne.s32.totalorder %s70, %s84
      %p86 = scmp.eq.s32.totalorder %s18, 0
      %p87 = por %p85, %p86
      %s88 = ssub.s32 %s12, %s19
      %p89 = scmp.eq.s32.totalorder %s88, 0
      %s91 = sadd.s32 %s90, 1
      %s92 = scalar_select %p89, %s90, %s91
      %p95 = pneg %p89
      %p96 = scmp.eq.s32.totalorder %s12, 1
      %p97 = por %p95, %p96
      %p98 = scmp.ne.s32.totalorder %s90, %s93
      %p99 = scmp.eq.s32.totalorder %s12, 0
      %p100 = por %p98, %p99
      %p101 = scmp.ne.s32.totalorder %s90, %s93
      %p102 = scmp.eq.s32.totalorder %s17, 1
      %p103 = por %p101, %p102
      %p104 = scmp.ne.s32.totalorder %s93, %s94
      %p105 = scmp.eq.s32.totalorder %s17, 0
      %p106 = por %p104, %p105
      %p107 = scmp.ne.s32.totalorder %s93, %s94
      %p108 = scmp.eq.s32.totalorder %s18, 1
      %p109 = por %p107, %p108
      %p111 = scmp.ne.s32.totalorder %s94, %s110
      %p112 = scmp.eq.s32.totalorder %s18, 0
      %p113 = por %p111, %p112
      %p114 = scmp.le.s32.totalorder 1, %s12
      %p115 = scmp.lt.s32.totalorder %s12, 3
      %p116 = pnand %p114, %p115
      %p117 = pneg %p116
      // Predicated region
      $region9: #{tpu_custom_call.1} parent=5 // pred_check
        _
      $region10: #{tpu_custom_call.1} parent=5 // pred_check_branch
        %119 = sbr.rel (%p116) target = $region12
      $region11: #{tpu_custom_call.1} parent=5 // pred_region
        %s120 = ssub.s32 %s12, 1
        // Predicated region
        $region13: #{tpu_custom_call.1} parent=11 // pred_check
          %p121 = pneg %p59
        $region14: #{tpu_custom_call.1} parent=11 // pred_check_branch
          %123 = sbr.rel (%p121) target = $region16
        $region15: #{tpu_custom_call.1} parent=11 // pred_region
          _
        $region16: #{tpu_custom_call.1} parent=11 // pred_fallthru
          _
        // Predicated region
        $region17: #{tpu_custom_call.1} parent=11 // pred_check
          %p124 = pneg %p80
        $region18: #{tpu_custom_call.1} parent=11 // pred_check_branch
          %126 = sbr.rel (%p124) target = $region20
        $region19: #{tpu_custom_call.1} parent=11 // pred_region
          _
        $region20: #{tpu_custom_call.1} parent=11 // pred_fallthru
          _
      $region12: #{tpu_custom_call.1} parent=5 // pred_fallthru
        _
      %p127 = scmp.lt.s32.totalorder %s12, 2
      // Predicated region
      $region21: #{tpu_custom_call.1} parent=5 // pred_check
        %p128 = pneg %p127
      $region22: #{tpu_custom_call.1} parent=5 // pred_check_branch
        %130 = sbr.rel (%p128) target = $region24
      $region23: #{tpu_custom_call.1} parent=5 // pred_region
        // Predicated region
        $region25: #{tpu_custom_call.1} parent=23 // pred_check
          %p131 = pneg %p32
        $region26: #{tpu_custom_call.1} parent=23 // pred_check_branch
          %133 = sbr.rel (%p131) target = $region28
        $region27: #{tpu_custom_call.1} parent=23 // pred_region
          %p134 = scmp.lt.s32.totalorder %s12, 1
          %s135 = scalar_select %p134, %s12, 1
          %s136 = smul.addr %s135, 4
          %s137 = scalar_lea.vmem %s0, %s136
        $region28: #{tpu_custom_call.1} parent=23 // pred_fallthru
          _
      $region24: #{tpu_custom_call.1} parent=5 // pred_fallthru
        _
      %p138 = scmp.le.s32.totalorder 1, %s12
      %p139 = scmp.lt.s32.totalorder %s12, 3
      %p140 = pnand %p138, %p139
      %p141 = pneg %p140
      // Predicated region
      $region29: #{tpu_custom_call.1} parent=5 // pred_check
        _
      $region30: #{tpu_custom_call.1} parent=5 // pred_check_branch
        %143 = sbr.rel (%p140) target = $region32
      $region31: #{tpu_custom_call.1} parent=5 // pred_region
        %s144 = ssub.s32 %s12, 1
        %p145 = scmp.lt.s32.totalorder %s17, 1
        %s146 = scalar_select %p145, %s17, 1
        %s147 = smul.addr %s146, 4
        %s148 = scalar_lea.vmem %s0, %s147
        %p149 = pneg %p38
        %p150 = pneg %p35
        %p151 = pneg %p59
        %p152 = pneg %p56
        %p153 = pneg %p80
        %p154 = pneg %p77
        %p155 = pneg %p106
        %p156 = pneg %p103
        %s157 = sand.u32 %s93, 1
        %s158 = scalar_lea.sflag [#allocation3], %s157
        %s159 = sand.u32 %s93, 1
        %s160 = smul.addr %s159, 4
        %s161 = scalar_lea.vmem [#allocation2], %s160
        %p162 = scmp.lt.s32.totalorder %s17, 1
        %s163 = scalar_select %p162, %s17, 1
        %s164 = smul.addr %s163, 4
        %s165 = scalar_lea.vmem %s0, %s164
        %v166 = vld [vmem:[%s165] sm:$0xf]
        %vm167 = vcmask 125952
        %v168 = vsel %vm167, %v166, 0.0
        %169 = vadd.xlane.f32.xlu0 %v168
        %v170 = vpop.xlane.xlu0 %169
        %v171 = vrot.slane %v170, 4
        %v172 = vadd.f32 %v170, %v171
        %v173 = vrot.slane %v172, 2
        %v174 = vadd.f32 %v172, %v173
        %v175 = vrot.slane %v174, 1
        %v176 = vadd.f32 %v174, %v175
        %s177 = vtos %v176
        %s178 = smul.f32 %s177, 0.015625
        %v179 = vstv %s178
        %v180 = vsub.f32 %v166, %v179
        %v181 = vmul.f32 %v180, %v180
        %v182 = vsel %vm167, %v181, 0.0
        %183 = vadd.xlane.f32.xlu0 %v182
        %v184 = vpop.xlane.xlu0 %183
        %v185 = vrot.slane %v184, 4
        %v186 = vadd.f32 %v184, %v185
        %v187 = vrot.slane %v186, 2
        %v188 = vadd.f32 %v186, %v187
        %v189 = vrot.slane %v188, 1
        %v190 = vadd.f32 %v188, %v189
        %s191 = vtos %v190
        %s192 = smul.f32 %s191, 0.015625
        %s193 = sadd.f32 %s192, 1e-08
        %v194 = vstv %s193
        %v195 = vrsqrt.pop %v194
        %s196 = vtos %v195
        %v197 = vld [vmem:[%s1] sm:$0xf]
        %v198 = vld [vmem:[%s2] sm:$0xf]
        %v199 = vstv %s196
        %v200 = vmul.f32 %v197, %v199
        %v201 = vmul.f32 %v179, %v200
        %v202 = vsub.f32 %v198, %v201
        %204 = vset.pattern.permute.xlu0 0
        %205 = vperm.xlu0 %204, %v200
        %v206 = vpop.permute.xlu0 %205
        %v208 = vmul.f32 %v166, %v206
        %210 = vset.pattern.permute.xlu0 0
        %211 = vperm.xlu0 %210, %v202
        %v212 = vpop.permute.xlu0 %211
        %v214 = vadd.f32 %v208, %v212
        %215 = vst.msk [vmem:[%s161] sm:$0xf] %vm167, %v214
        %s216 = sand.u32 %s93, 1
        %s217 = scalar_lea.sflag [#allocation3], %s216
        %s218 = sand.u32 %s93, 1
        %s219 = smul.addr %s218, 4
        %s220 = scalar_lea.vmem [#allocation2], %s219
        // Predicated region
        $region33: #{tpu_custom_call.1} parent=31 // pred_check
          %p221 = pneg %p103
        $region34: #{tpu_custom_call.1} parent=31 // pred_check_branch
          %223 = sbr.rel (%p221) target = $region36
        $region35: #{tpu_custom_call.1} parent=31 // pred_region
          %s225 = ssub.s32 64, 64
          %226 = vsyncadd %s217, %s225
          %s227 = smul.addr %s17, 64
          %s228 = scalar_lea.hbm %s3, %s227
          %s230 = sshll.u32 %s220, 4
          %s231 = int_to_ptr.vmem [resolvable:$true] %s230
          %233 = dma.vmem_to_hbm [thread:$0]  %s231, 64, %s228, %s217
        $region36: #{tpu_custom_call.1} parent=31 // pred_fallthru
          _
      $region32: #{tpu_custom_call.1} parent=5 // pred_fallthru
        _
      %p234 = scmp.le.s32.totalorder 2, %s12
      // Predicated region
      $region37: #{tpu_custom_call.1} parent=5 // pred_check
        %p235 = pneg %p234
      $region38: #{tpu_custom_call.1} parent=5 // pred_check_branch
        %237 = sbr.rel (%p235) target = $region40
      $region39: #{tpu_custom_call.1} parent=5 // pred_region
        %s238 = ssub.s32 %s12, 2
        // Predicated region
        $region41: #{tpu_custom_call.1} parent=39 // pred_check
          %p239 = pneg %p109
        $region42: #{tpu_custom_call.1} parent=39 // pred_check_branch
          %241 = sbr.rel (%p239) target = $region44
        $region43: #{tpu_custom_call.1} parent=39 // pred_region
          %s242 = sand.u32 %s94, 1
          %s243 = scalar_lea.sflag [#allocation3], %s242
          %s244 = sand.u32 %s94, 1
          %s245 = smul.addr %s244, 4
          %s246 = scalar_lea.vmem [#allocation2], %s245
          %247 = dma.done %s243, 64
        $region44: #{tpu_custom_call.1} parent=39 // pred_fallthru
          _
      $region40: #{tpu_custom_call.1} parent=5 // pred_fallthru
        _
    $region6: #{tpu_custom_call.1} parent=1 // loop_footer
      %s16 = sadd.s32 1, %s12
    $region7: #{tpu_custom_call.1} parent=1 // loop_footer_branch
      %11 = sbr.rel target = $region3
    $region8: #{tpu_custom_call.1} parent=1 // loop_exit
      _
    %248 = vsyncpa [#allocation3], 1
    %s249 = scalar_lea.sflag [#allocation3], 1
    %250 = vsyncpa %s249, 1

</llo_original>
